<compile_context>
chip_gen: v7x
topology: tpu7x:2x2x1
jax: 0.10.0
libtpu: 0.0.40
codegen_flags: <defaults>
</compile_context>

<pallas_src>
import numpy as np
import jax
import jax.numpy as jnp
from jax.experimental import pallas as pl
from jax.experimental.pallas import tpu as pltpu

STD_SCALE = 0.02
MODALITY_NAMES_TYPES = {"sag": "image", "cor": "image", "axi": "image", "volume": "state"}
_LANE = 128
_MIN_TB = 16      # bf16 sublane packing granule


def _round_up(n, m):
    return ((n + m - 1) // m) * m


def get_sinusoid_encoding_table(start, n_position, d_hid):
    """Standard sinusoid table, shape (1, n_position, d_hid)."""
    pos = np.arange(start, start + n_position, dtype=np.float64)[:, None]
    dim = np.arange(d_hid, dtype=np.float64)[None, :]
    angle = pos / np.power(10000.0, 2.0 * (dim // 2) / d_hid)
    table = np.zeros((n_position, d_hid), dtype=np.float32)
    table[:, 0::2] = np.sin(angle[:, 0::2])
    table[:, 1::2] = np.cos(angle[:, 1::2])
    return jnp.asarray(table[None])                                   # (1, T, E)


# ------------------------------ fused Pallas kernel -------------------------- #

def fused_adni_kernel(x_ref, w1_ref, b1_ref, w2_ref, b2pe_ref,
                      hw1_ref, hb1_ref, hw2_ref, hb2_ref, hw3_ref, hb3_ref,
                      o_ref):
    """x -> silu(fc1) -> fc2(+pos-emb) -> [trunk, mean over T=1] -> relu(fc1) -> relu(fc2) -> fc3."""
    cdt = w1_ref.dtype                                  # matmul operand dtype (bf16 or f32)
    # In-kernel operand cast: x stays f32 in HBM, VPU cast is hidden under the MXU slot.
    x = x_ref[...].astype(cdt)                          # (TB, D_in)

    # StateEncoder: silu(fc1(x)) -> fc2   (f32 accumulation on the MXU, f32 activations)
    h = jnp.dot(x, w1_ref[...], preferred_element_type=jnp.float32) + b1_ref[...]
    h = h * jax.nn.sigmoid(h)                           # SiLU in f32 (VPU + EUP)
    # fc2 bias already has the T=1 sinusoid positional-embedding row folded in.
    tok = jnp.dot(h.astype(cdt), w2_ref[...],
                  preferred_element_type=jnp.float32) + b2pe_ref[...]   # (TB, E)

    # TODO(synk): `trunk` is an externally injected module (no code provided); identity here.
    # mean(dim=1) over a single token is a no-op and is elided.

    # MLPDecoder head (N dims zero-padded to 128 -> full MXU columns)
    y = jnp.maximum(jnp.dot(tok.astype(cdt), hw1_ref[...],
                            preferred_element_type=jnp.float32) + hb1_ref[...], 0.0)
    y = jnp.maximum(jnp.dot(y.astype(cdt), hw2_ref[...],
                            preferred_element_type=jnp.float32) + hb2_ref[...], 0.0)

    # Final layer has N=1: VPU multiply against the single real weight column (stored as a
    # (1,128) zero-padded row) + XLU lane reduce -> narrow (TB, 1) store.  Operands are
    # quantized to `cdt` first so this matches the MXU bf16/f32 reference numerics.
    yq = y.astype(cdt).astype(jnp.float32)
    w3 = hw3_ref[...].astype(jnp.float32)               # (1, 128)
    o_ref[...] = jnp.sum(yq * w3, axis=-1, keepdims=True) + hb3_ref[...]   # (TB, 1)


# ------------------------------ parameter packing ---------------------------- #

def prepare_params(params, *, compute_dtype=jnp.bfloat16):
    """One-time host-side prep: fold T=1 pos-emb into fc2 bias, zero-pad head weights
    to 128-lane multiples, cast matmul operands to the compute dtype (biases stay f32)."""
    E = params["se_w2"].shape[1]
    pe_row = np.asarray(get_sinusoid_encoding_table(0, 1, E))[0, 0]   # (E,)

    def pad2(a, rows, cols):
        r, c = a.shape
        return jnp.pad(a, ((0, rows - r), (0, cols - c)))

    H1 = _round_up(params["h_w1"].shape[1], _LANE)   # 120 -> 128
    H2 = _round_up(params["h_w2"].shape[1], _LANE)   # 84  -> 128

    p = {
        "w1":  params["se_w1"].astype(compute_dtype),
        "b1":  params["se_b1"].astype(jnp.float32),
        "w2":  params["se_w2"].astype(compute_dtype),
        "b2":  params["se_b2"].astype(jnp.float32) + pe_row[None, :],   # pos-emb folded (T=1)
        "hw1": pad2(params["h_w1"], E,  H1).astype(compute_dtype),
        "hb1": pad2(params["h_b1"], 1,  H1).astype(jnp.float32),
        "hw2": pad2(params["h_w2"], H1, H2).astype(compute_dtype),
        "hb2": pad2(params["h_b2"], 1,  H2).astype(jnp.float32),
        "hw3": pad2(params["h_w3"].T, 1, H2).astype(compute_dtype),     # (1, 128) row
        "hb3": params["h_b3"].astype(jnp.float32),                      # (1, 1)
        "compute_dtype": compute_dtype,
    }
    return p


# ------------------------------ forward wrapper ------------------------------ #

def adni_forward(data, prepared, *, block_rows=1024,
                 modality_names_types=MODALITY_NAMES_TYPES):
    """Mirrors ADNIModel.forward for the provided modalities (state-only path)."""
    state_inputs = []
    for modality, val in data.items():
        mtype = modality_names_types[modality]
        if "image" in mtype:
            # TODO(synk): image path needs generate_model() 3D ResNet-18 encoder and
            # image_stem.compute_latent(); neither is provided, so it is not implemented.
            raise NotImplementedError("image modality path not available")
        if "state" in mtype:
            state_inputs.append(val)
    assert len(state_inputs) == 1, "fused kernel is specialized to a single state token (T=1)"
    x = state_inputs[0]
    B, D_in = x.shape

    # Batch tiling: derive TB from B (caps padding at <16 rows per tile).  Force >=2 grid
    # steps when B is big enough so dimension_semantics=("parallel",) can shard across the
    # two v7x TensorCores; neutral on v5e/v6e.
    n_tiles = pl.cdiv(B, block_rows)
    if B >= 2 * _MIN_TB:
        n_tiles = max(n_tiles, 2)
    TB = _round_up(pl.cdiv(B, n_tiles), _MIN_TB)
    B_pad = TB * n_tiles
    if B_pad != B:
        x = jnp.pad(x, ((0, B_pad - B), (0, 0)))    # x stays in its native (f32) dtype

    weights = (prepared["w1"], prepared["b1"], prepared["w2"], prepared["b2"],
               prepared["hw1"], prepared["hb1"], prepared["hw2"], prepared["hb2"],
               prepared["hw3"], prepared["hb3"])

    grid_spec = pltpu.PrefetchScalarGridSpec(
        num_scalar_prefetch=0,
        grid=(n_tiles,),
        in_specs=[pl.BlockSpec((TB, D_in), lambda i: (i, 0))]                   # x tile
                 # Weights/biases: constant index_map -> VMEM-resident across the grid.
                 # (Kept at default buffering for compile safety; tiny ~0.4 MiB anyway.)
                 + [pl.BlockSpec(w.shape, lambda i: (0, 0)) for w in weights],
        out_specs=pl.BlockSpec((TB, 1), lambda i: (i, 0)),                      # narrow store
    )

    out = pl.pallas_call(
        fused_adni_kernel,
        out_shape=jax.ShapeDtypeStruct((B_pad, 1), jnp.float32),
        grid_spec=grid_spec,
        compiler_params=pltpu.CompilerParams(
            dimension_semantics=("parallel",),
            vmem_limit_bytes=32 * 1024 * 1024),
    )(x, *weights)

    return out[:B]                                                     # (B, 1)


# ------------------------------ parameter init ------------------------------- #

def init_params(key, state_input_dim=280, embed_dim=256):
    def linear(k, fan_in, fan_out):
        kw, kb = jax.random.split(k)
        bound = 1.0 / np.sqrt(fan_in)
        w = jax.random.uniform(kw, (fan_in, fan_out), jnp.float32, -bound, bound)
        b = jax.random.uniform(kb, (1, fan_out), jnp.float32, -bound, bound)
        return w, b
    ks = jax.random.split(key, 5)
    p = {}
    p["se_w1"], p["se_b1"] = linear(ks[0], state_input_dim, embed_dim)   # StateEncoder.fc1
    p["se_w2"], p["se_b2"] = linear(ks[1], embed_dim, embed_dim)         # StateEncoder.fc2
    p["h_w1"], p["h_b1"] = linear(ks[2], embed_dim, 120)                 # MLPDecoder.fc1
    p["h_w2"], p["h_b2"] = linear(ks[3], 120, 84)                        # MLPDecoder.fc2
    p["h_w3"], p["h_b3"] = linear(ks[4], 84, 1)                          # MLPDecoder.fc3
    return p


# ------------------------------ pure-JAX reference --------------------------- #

def adni_forward_ref(data, params, compute_dtype=jnp.float32):
    """PyTorch ADNIModel semantics (trunk=identity, T=1).  `compute_dtype` emulates the
    kernel's matmul-operand precision (f32 accumulation either way)."""
    x = data["volume"]

    def mm(a, w):
        return jnp.dot(a.astype(compute_dtype), w.astype(compute_dtype),
                       preferred_element_type=jnp.float32)

    h = mm(x, params["se_w1"]) + params["se_b1"]
    h = h * jax.nn.sigmoid(h)
    tok = (mm(h, params["se_w2"]) + params["se_b2"])[:, None, :]
    tok = tok + get_sinusoid_encoding_table(0, tok.shape[1], tok.shape[-1])
    pooled = tok.mean(axis=1)
    y = jnp.maximum(mm(pooled, params["h_w1"]) + params["h_b1"], 0.0)
    y = jnp.maximum(mm(y, params["h_w2"]) + params["h_b2"], 0.0)
    return mm(y, params["h_w3"]) + params["h_b3"]


if __name__ == "__main__":
    key = jax.random.PRNGKey(0)
    kp, kx = jax.random.split(key)
    params = init_params(kp)

    B = 2
    x_volume = jax.random.normal(kx, (B, 280), dtype=jnp.float32)
    data = {"volume": x_volume}

    # 1) f32 operands: semantics check against the PyTorch-faithful reference.
    prep_f32 = prepare_params(params, compute_dtype=jnp.float32)
    out_f32 = jax.block_until_ready(adni_forward(data, prep_f32))
    ref_f32 = adni_forward_ref(data, params, compute_dtype=jnp.float32)
    np.testing.assert_allclose(np.asarray(out_f32), np.asarray(ref_f32), rtol=1e-4, atol=1e-4)

    # 2) bf16 operands (default perf config): check against the matched-precision reference.
    prep_bf16 = prepare_params(params, compute_dtype=jnp.bfloat16)
    out_bf16 = jax.block_until_ready(adni_forward(data, prep_bf16))
    ref_bf16 = adni_forward_ref(data, params, compute_dtype=jnp.bfloat16)
    np.testing.assert_allclose(np.asarray(out_bf16), np.asarray(ref_bf16), rtol=2e-3, atol=2e-3)

    # 3) Multi-tile grid + batch padding path (B not a multiple of the tile).
    xb = jax.random.normal(jax.random.PRNGKey(1), (600, 280), dtype=jnp.float32)
    data_big = {"volume": xb}
    out_big = jax.block_until_ready(adni_forward(data_big, prep_bf16, block_rows=256))
    ref_big = adni_forward_ref(data_big, params, compute_dtype=jnp.bfloat16)
    np.testing.assert_allclose(np.asarray(out_big), np.asarray(ref_big), rtol=2e-3, atol=2e-3)

    print("KERNEL_OK")
</pallas_src>

<mosaic_0001>
module attributes {stable_mosaic.version = 11 : i64} {
  func.func @fused_adni_kernel(%arg0: i32, %arg1: memref<16x280xf32, #tpu.memory_space<vmem>>, %arg2: memref<280x256xf32, #tpu.memory_space<vmem>>, %arg3: memref<1x256xf32, #tpu.memory_space<vmem>>, %arg4: memref<256x256xf32, #tpu.memory_space<vmem>>, %arg5: memref<1x256xf32, #tpu.memory_space<vmem>>, %arg6: memref<256x128xf32, #tpu.memory_space<vmem>>, %arg7: memref<1x128xf32, #tpu.memory_space<vmem>>, %arg8: memref<128x128xf32, #tpu.memory_space<vmem>>, %arg9: memref<1x128xf32, #tpu.memory_space<vmem>>, %arg10: memref<1x128xf32, #tpu.memory_space<vmem>>, %arg11: memref<1x1xf32, #tpu.memory_space<vmem>>, %arg12: memref<16x1xf32, #tpu.memory_space<vmem>>) attributes {dimension_semantics = [#tpu.dimension_semantics<parallel>], iteration_bounds = array<i64: 1>, scalar_prefetch = 0 : i64, scratch_operands = 0 : i64, tpu.core_type = #tpu.core_type<tc>, window_params = [{transform_indices = @transform_0, window_bounds = array<i64: 16, 280>}, {pipeline_mode = #tpu.pipeline_mode<synchronous>, transform_indices = @transform_1, window_bounds = array<i64: 280, 256>}, {pipeline_mode = #tpu.pipeline_mode<synchronous>, transform_indices = @transform_2, window_bounds = array<i64: 1, 256>}, {pipeline_mode = #tpu.pipeline_mode<synchronous>, transform_indices = @transform_3, window_bounds = array<i64: 256, 256>}, {pipeline_mode = #tpu.pipeline_mode<synchronous>, transform_indices = @transform_4, window_bounds = array<i64: 1, 256>}, {pipeline_mode = #tpu.pipeline_mode<synchronous>, transform_indices = @transform_5, window_bounds = array<i64: 256, 128>}, {pipeline_mode = #tpu.pipeline_mode<synchronous>, transform_indices = @transform_6, window_bounds = array<i64: 1, 128>}, {pipeline_mode = #tpu.pipeline_mode<synchronous>, transform_indices = @transform_7, window_bounds = array<i64: 128, 128>}, {pipeline_mode = #tpu.pipeline_mode<synchronous>, transform_indices = @transform_8, window_bounds = array<i64: 1, 128>}, {pipeline_mode = #tpu.pipeline_mode<synchronous>, transform_indices = @transform_9, window_bounds = array<i64: 1, 128>}, {pipeline_mode = #tpu.pipeline_mode<synchronous>, transform_indices = @transform_10, window_bounds = array<i64: 1, 1>}, {transform_indices = @transform_11, window_bounds = array<i64: 16, 1>}]} {
    %c0 = arith.constant 0 : index
    %c0_0 = arith.constant 0 : index
    %0 = vector.load %arg1[%c0, %c0_0] : memref<16x280xf32, #tpu.memory_space<vmem>>, vector<16x280xf32>
    %c0_1 = arith.constant 0 : index
    %c0_2 = arith.constant 0 : index
    %1 = vector.load %arg2[%c0_1, %c0_2] : memref<280x256xf32, #tpu.memory_space<vmem>>, vector<280x256xf32>
    %cst = arith.constant dense<0.000000e+00> : vector<16x256xf32>
    %2 = tpu.matmul %0, %1, %cst {dimension_numbers = #tpu.dot_dimension_numbers<[1], [0], [0], [1], [0, 0, 1, 1], [], []>} : vector<16x280xf32>, vector<280x256xf32>, vector<16x256xf32> -> vector<16x256xf32>
    %c0_3 = arith.constant 0 : index
    %c0_4 = arith.constant 0 : index
    %3 = vector.load %arg3[%c0_3, %c0_4] : memref<1x256xf32, #tpu.memory_space<vmem>>, vector<1x256xf32>
    %4 = vector.broadcast %3 : vector<1x256xf32> to vector<16x256xf32>
    %5 = arith.addf %2, %4 : vector<16x256xf32>
    %6 = arith.negf %5 : vector<16x256xf32>
    %7 = math.exp %6 : vector<16x256xf32>
    %cst_5 = arith.constant 1.000000e+00 : f32
    %8 = vector.broadcast %cst_5 : f32 to vector<16x256xf32>
    %9 = arith.addf %8, %7 : vector<16x256xf32>
    %10 = arith.divf %8, %9 : vector<16x256xf32>
    %11 = arith.mulf %5, %10 : vector<16x256xf32>
    %c0_6 = arith.constant 0 : index
    %c0_7 = arith.constant 0 : index
    %12 = vector.load %arg4[%c0_6, %c0_7] : memref<256x256xf32, #tpu.memory_space<vmem>>, vector<256x256xf32>
    %cst_8 = arith.constant dense<0.000000e+00> : vector<16x256xf32>
    %13 = tpu.matmul %11, %12, %cst_8 {dimension_numbers = #tpu.dot_dimension_numbers<[1], [0], [0], [1], [0, 0, 1, 1], [], []>} : vector<16x256xf32>, vector<256x256xf32>, vector<16x256xf32> -> vector<16x256xf32>
    %c0_9 = arith.constant 0 : index
    %c0_10 = arith.constant 0 : index
    %14 = vector.load %arg5[%c0_9, %c0_10] : memref<1x256xf32, #tpu.memory_space<vmem>>, vector<1x256xf32>
    %15 = vector.broadcast %14 : vector<1x256xf32> to vector<16x256xf32>
    %16 = arith.addf %13, %15 : vector<16x256xf32>
    %c0_11 = arith.constant 0 : index
    %c0_12 = arith.constant 0 : index
    %17 = vector.load %arg6[%c0_11, %c0_12] : memref<256x128xf32, #tpu.memory_space<vmem>>, vector<256x128xf32>
    %cst_13 = arith.constant dense<0.000000e+00> : vector<16x128xf32>
    %18 = tpu.matmul %16, %17, %cst_13 {dimension_numbers = #tpu.dot_dimension_numbers<[1], [0], [0], [1], [0, 0, 1, 1], [], []>} : vector<16x256xf32>, vector<256x128xf32>, vector<16x128xf32> -> vector<16x128xf32>
    %c0_14 = arith.constant 0 : index
    %c0_15 = arith.constant 0 : index
    %19 = vector.load %arg7[%c0_14, %c0_15] : memref<1x128xf32, #tpu.memory_space<vmem>>, vector<1x128xf32>
    %20 = vector.broadcast %19 : vector<1x128xf32> to vector<16x128xf32>
    %21 = arith.addf %18, %20 : vector<16x128xf32>
    %cst_16 = arith.constant 0.000000e+00 : f32
    %22 = vector.broadcast %cst_16 : f32 to vector<16x128xf32>
    %23 = arith.maximumf %21, %22 : vector<16x128xf32>
    %c0_17 = arith.constant 0 : index
    %c0_18 = arith.constant 0 : index
    %24 = vector.load %arg8[%c0_17, %c0_18] : memref<128x128xf32, #tpu.memory_space<vmem>>, vector<128x128xf32>
    %cst_19 = arith.constant dense<0.000000e+00> : vector<16x128xf32>
    %25 = tpu.matmul %23, %24, %cst_19 {dimension_numbers = #tpu.dot_dimension_numbers<[1], [0], [0], [1], [0, 0, 1, 1], [], []>} : vector<16x128xf32>, vector<128x128xf32>, vector<16x128xf32> -> vector<16x128xf32>
    %c0_20 = arith.constant 0 : index
    %c0_21 = arith.constant 0 : index
    %26 = vector.load %arg9[%c0_20, %c0_21] : memref<1x128xf32, #tpu.memory_space<vmem>>, vector<1x128xf32>
    %27 = vector.broadcast %26 : vector<1x128xf32> to vector<16x128xf32>
    %28 = arith.addf %25, %27 : vector<16x128xf32>
    %cst_22 = arith.constant 0.000000e+00 : f32
    %29 = vector.broadcast %cst_22 : f32 to vector<16x128xf32>
    %30 = arith.maximumf %28, %29 : vector<16x128xf32>
    %c0_23 = arith.constant 0 : index
    %c0_24 = arith.constant 0 : index
    %31 = vector.load %arg10[%c0_23, %c0_24] : memref<1x128xf32, #tpu.memory_space<vmem>>, vector<1x128xf32>
    %32 = vector.broadcast %31 : vector<1x128xf32> to vector<16x128xf32>
    %33 = arith.mulf %30, %32 : vector<16x128xf32>
    %cst_25 = arith.constant dense<0.000000e+00> : vector<16xf32>
    %34 = vector.multi_reduction <add>, %33, %cst_25 [1] : vector<16x128xf32> to vector<16xf32>
    %35 = vector.shape_cast %34 : vector<16xf32> to vector<16x1xf32>
    %c0_26 = arith.constant 0 : index
    %c0_27 = arith.constant 0 : index
    %36 = vector.load %arg11[%c0_26, %c0_27] : memref<1x1xf32, #tpu.memory_space<vmem>>, vector<1x1xf32>
    %37 = vector.broadcast %36 : vector<1x1xf32> to vector<16x1xf32>
    %38 = arith.addf %35, %37 : vector<16x1xf32>
    %c0_28 = arith.constant 0 : index
    %c0_29 = arith.constant 0 : index
    %39 = vector.load %arg12[%c0_28, %c0_29] : memref<16x1xf32, #tpu.memory_space<vmem>>, vector<16x1xf32>
    tpu.vector_store %arg12[%c0_28, %c0_29], %38 {strides = array<i32>} : memref<16x1xf32, #tpu.memory_space<vmem>>, vector<16x1xf32>,
    return
  }
  func.func @transform_0(%arg0: i32) -> (i32, i32) {
    %c0_i32 = arith.constant 0 : i32
    %c0_i32_0 = arith.constant 0 : i32
    return %arg0, %c0_i32 : i32, i32
  }
  func.func @transform_1(%arg0: i32) -> (i32, i32) {
    %c0_i32 = arith.constant 0 : i32
    %c0_i32_0 = arith.constant 0 : i32
    %c0_i32_1 = arith.constant 0 : i32
    return %c0_i32, %c0_i32_0 : i32, i32
  }
  func.func @transform_2(%arg0: i32) -> (i32, i32) {
    %c0_i32 = arith.constant 0 : i32
    %c0_i32_0 = arith.constant 0 : i32
    %c0_i32_1 = arith.constant 0 : i32
    return %c0_i32, %c0_i32_0 : i32, i32
  }
  func.func @transform_3(%arg0: i32) -> (i32, i32) {
    %c0_i32 = arith.constant 0 : i32
    %c0_i32_0 = arith.constant 0 : i32
    %c0_i32_1 = arith.constant 0 : i32
    return %c0_i32, %c0_i32_0 : i32, i32
  }
  func.func @transform_4(%arg0: i32) -> (i32, i32) {
    %c0_i32 = arith.constant 0 : i32
    %c0_i32_0 = arith.constant 0 : i32
    %c0_i32_1 = arith.constant 0 : i32
    return %c0_i32, %c0_i32_0 : i32, i32
  }
  func.func @transform_5(%arg0: i32) -> (i32, i32) {
    %c0_i32 = arith.constant 0 : i32
    %c0_i32_0 = arith.constant 0 : i32
    %c0_i32_1 = arith.constant 0 : i32
    return %c0_i32, %c0_i32_0 : i32, i32
  }
  func.func @transform_6(%arg0: i32) -> (i32, i32) {
    %c0_i32 = arith.constant 0 : i32
    %c0_i32_0 = arith.constant 0 : i32
    %c0_i32_1 = arith.constant 0 : i32
    return %c0_i32, %c0_i32_0 : i32, i32
  }
  func.func @transform_7(%arg0: i32) -> (i32, i32) {
    %c0_i32 = arith.constant 0 : i32
    %c0_i32_0 = arith.constant 0 : i32
    %c0_i32_1 = arith.constant 0 : i32
    return %c0_i32, %c0_i32_0 : i32, i32
  }
  func.func @transform_8(%arg0: i32) -> (i32, i32) {
    %c0_i32 = arith.constant 0 : i32
    %c0_i32_0 = arith.constant 0 : i32
    %c0_i32_1 = arith.constant 0 : i32
    return %c0_i32, %c0_i32_0 : i32, i32
  }
  func.func @transform_9(%arg0: i32) -> (i32, i32) {
    %c0_i32 = arith.constant 0 : i32
    %c0_i32_0 = arith.constant 0 : i32
    %c0_i32_1 = arith.constant 0 : i32
    return %c0_i32, %c0_i32_0 : i32, i32
  }
  func.func @transform_10(%arg0: i32) -> (i32, i32) {
    %c0_i32 = arith.constant 0 : i32
    %c0_i32_0 = arith.constant 0 : i32
    %c0_i32_1 = arith.constant 0 : i32
    return %c0_i32, %c0_i32_0 : i32, i32
  }
  func.func @transform_11(%arg0: i32) -> (i32, i32) {
    %c0_i32 = arith.constant 0 : i32
    %c0_i32_0 = arith.constant 0 : i32
    return %arg0, %c0_i32 : i32, i32
  }
}

</mosaic_0001>

<llo_original>
// kernel: tpu_custom_call.1
$region0: #{tpu_custom_call.1}
  #allocation0 [shape = 'u32[]', space=smem, size = 0x4, offset = 0x4, fixed_abs, tag = 'smem constant byte address 0x4 - core index']
  #allocation1 [shape = 'u32[144,128]{1,0:T(1,128)}', space=vmem, size = 0x12000, scoped, tag = 'internal scratch']
  #allocation2 [shape = 'f32[1,1]{1,0:T(1,128)S(1)}', space=vmem, size = 0x200, scoped, tag = 'scoped memory for tpu_custom_call.1']
  %s0 = inlined_call_operand.hbm [shape: f32[16,280], index: 0, kind: input, shape index: {}]
  %s1 = inlined_call_operand.hbm [shape: f32[280,256], index: 1, kind: input, shape index: {}]
  %s2 = inlined_call_operand.vmem [shape: f32[1,256], index: 2, kind: input, shape index: {}]
  %s3 = inlined_call_operand.hbm [shape: f32[256,256], index: 3, kind: input, shape index: {}]
  %s4 = inlined_call_operand.vmem [shape: f32[1,256], index: 4, kind: input, shape index: {}]
  %s5 = inlined_call_operand.hbm [shape: f32[256,128], index: 5, kind: input, shape index: {}]
  %s6 = inlined_call_operand.vmem [shape: f32[1,128], index: 6, kind: input, shape index: {}]
  %s7 = inlined_call_operand.hbm [shape: f32[128,128], index: 7, kind: input, shape index: {}]
  %s8 = inlined_call_operand.vmem [shape: f32[1,128], index: 8, kind: input, shape index: {}]
  %s9 = inlined_call_operand.vmem [shape: f32[1,128], index: 9, kind: input, shape index: {}]
  %s10 = inlined_call_operand.<no memory space> [shape: f32[1,1], index: 10, kind: input, shape index: {}]
  %s11 = inlined_call_operand.vmem [shape: f32[16,1], index: 11, kind: output, shape index: {}]
  %s12 = sld [smem:[#allocation0]]
  $region74: #{tpu_custom_call.1} parent=0
    _
  %s14 = ssub.s32 1, %s12
  %s15 = scalar_select 0, %s14, %s12
  %v16 = vstv %s10
  %17 = vst [vmem:[#allocation2] sm:$0x1] %v16
  $region1: #{tpu_custom_call.1} parent=0
    #allocation3 [shape = 'u8[24576]{0}', space=vmem, size = 0x6000, scoped, tag = 'input window, operand 0, single buffered']
    #allocation4 [shape = 's32[1]{0}', space=sflag, size = 0x4, scoped, tag = 'scoped memory for tpu_custom_call.1']
    #allocation5 [shape = 'u8[286720]{0}', space=vmem, size = 0x46000, scoped, tag = 'input window, operand 1, single buffered']
    #allocation6 [shape = 's32[1]{0}', space=sflag, size = 0x4, scoped, tag = 'scoped memory for tpu_custom_call.1']
    #allocation7 [shape = 'u8[262144]{0}', space=vmem, size = 0x40000, scoped, tag = 'input window, operand 3, single buffered']
    #allocation8 [shape = 'u8[131072]{0}', space=vmem, size = 0x20000, scoped, tag = 'input window, operand 5, single buffered']
    #allocation9 [shape = 's32[1]{0}', space=sflag, size = 0x4, scoped, tag = 'scoped memory for tpu_custom_call.1']
    #allocation10 [shape = 'u8[65536]{0}', space=vmem, size = 0x10000, scoped, tag = 'input window, operand 7, single buffered']
    %18 = vsyncpa [#allocation4], 0
    %19 = vsyncpa [#allocation6], 0
    %20 = vsyncpa [#allocation9], 0
    // Predicated region
    $region2: #{tpu_custom_call.1} parent=1 // pred_check
      _
    $region3: #{tpu_custom_call.1} parent=1 // pred_check_branch
      %22 = sbr.rel (0) target = $region5
    $region4: #{tpu_custom_call.1} parent=1 // pred_region
      %s24 = ssub.s32 768, 768
      %25 = vsyncadd [#allocation4], %s24
      %s26 = sshll.u32 [#allocation3], 4
      %s27 = int_to_ptr.vmem [resolvable:$true] %s26
      %32 = dma.hbm_to_vmem [thread:$0]  %s0, 768, %s27, [#allocation4], 384, 384, 24
    $region5: #{tpu_custom_call.1} parent=1 // pred_fallthru
      _
    // Predicated region
    $region6: #{tpu_custom_call.1} parent=1 // pred_check
      _
    $region7: #{tpu_custom_call.1} parent=1 // pred_check_branch
      %34 = sbr.rel (0) target = $region9
    $region8: #{tpu_custom_call.1} parent=1 // pred_region
      %s36 = ssub.s32 8960, 8960
      %37 = vsyncadd [#allocation6], %s36
      %s38 = sshll.u32 [#allocation5], 4
      %s39 = int_to_ptr.vmem [resolvable:$true] %s38
      %44 = dma.hbm_to_vmem [thread:$0]  %s1, 8960, %s39, [#allocation6], 256, 256, 16
    $region9: #{tpu_custom_call.1} parent=1 // pred_fallthru
      _
    // Predicated region
    $region10: #{tpu_custom_call.1} parent=1 // pred_check
      _
    $region11: #{tpu_custom_call.1} parent=1 // pred_check_branch
      %46 = sbr.rel (0) target = $region13
    $region12: #{tpu_custom_call.1} parent=1 // pred_region
      _
    $region13: #{tpu_custom_call.1} parent=1 // pred_fallthru
      _
    // Predicated region
    $region14: #{tpu_custom_call.1} parent=1 // pred_check
      _
    $region15: #{tpu_custom_call.1} parent=1 // pred_check_branch
      %48 = sbr.rel (0) target = $region17
    $region16: #{tpu_custom_call.1} parent=1 // pred_region
      %s50 = ssub.s32 8192, 8192
      %51 = vsyncadd [#allocation6], %s50
      %s52 = sshll.u32 [#allocation7], 4
      %s53 = int_to_ptr.vmem [resolvable:$true] %s52
      %58 = dma.hbm_to_vmem [thread:$0]  %s3, 8192, %s53, [#allocation6], 256, 256, 16
    $region17: #{tpu_custom_call.1} parent=1 // pred_fallthru
      _
    // Predicated region
    $region18: #{tpu_custom_call.1} parent=1 // pred_check
      _
    $region19: #{tpu_custom_call.1} parent=1 // pred_check_branch
      %60 = sbr.rel (0) target = $region21
    $region20: #{tpu_custom_call.1} parent=1 // pred_region
      _
    $region21: #{tpu_custom_call.1} parent=1 // pred_fallthru
      _
    // Predicated region
    $region22: #{tpu_custom_call.1} parent=1 // pred_check
      _
    $region23: #{tpu_custom_call.1} parent=1 // pred_check_branch
      %62 = sbr.rel (0) target = $region25
    $region24: #{tpu_custom_call.1} parent=1 // pred_region
      %s64 = ssub.s32 4096, 4096
      %65 = vsyncadd [#allocation9], %s64
      %s66 = sshll.u32 [#allocation8], 4
      %s67 = int_to_ptr.vmem [resolvable:$true] %s66
      %72 = dma.hbm_to_vmem [thread:$0]  %s5, 4096, %s67, [#allocation9], 128, 128, 8
    $region25: #{tpu_custom_call.1} parent=1 // pred_fallthru
      _
    // Predicated region
    $region26: #{tpu_custom_call.1} parent=1 // pred_check
      _
    $region27: #{tpu_custom_call.1} parent=1 // pred_check_branch
      %74 = sbr.rel (0) target = $region29
    $region28: #{tpu_custom_call.1} parent=1 // pred_region
      _
    $region29: #{tpu_custom_call.1} parent=1 // pred_fallthru
      _
    // Predicated region
    $region30: #{tpu_custom_call.1} parent=1 // pred_check
      _
    $region31: #{tpu_custom_call.1} parent=1 // pred_check_branch
      %76 = sbr.rel (0) target = $region33
    $region32: #{tpu_custom_call.1} parent=1 // pred_region
      %s78 = ssub.s32 2048, 2048
      %79 = vsyncadd [#allocation9], %s78
      %s80 = sshll.u32 [#allocation10], 4
      %s81 = int_to_ptr.vmem [resolvable:$true] %s80
      %86 = dma.hbm_to_vmem [thread:$0]  %s7, 2048, %s81, [#allocation9], 128, 128, 8
    $region33: #{tpu_custom_call.1} parent=1 // pred_fallthru
      _
    // Predicated region
    $region34: #{tpu_custom_call.1} parent=1 // pred_check
      _
    $region35: #{tpu_custom_call.1} parent=1 // pred_check_branch
      %88 = sbr.rel (0) target = $region37
    $region36: #{tpu_custom_call.1} parent=1 // pred_region
      _
    $region37: #{tpu_custom_call.1} parent=1 // pred_fallthru
      _
    // Predicated region
    $region38: #{tpu_custom_call.1} parent=1 // pred_check
      _
    $region39: #{tpu_custom_call.1} parent=1 // pred_check_branch
      %90 = sbr.rel (0) target = $region41
    $region40: #{tpu_custom_call.1} parent=1 // pred_region
      _
    $region41: #{tpu_custom_call.1} parent=1 // pred_fallthru
      _
    // Predicated region
    $region42: #{tpu_custom_call.1} parent=1 // pred_check
      _
    $region43: #{tpu_custom_call.1} parent=1 // pred_check_branch
      %92 = sbr.rel (0) target = $region45
    $region44: #{tpu_custom_call.1} parent=1 // pred_region
      _
    $region45: #{tpu_custom_call.1} parent=1 // pred_fallthru
      _
    // Predicated region
    $region46: #{tpu_custom_call.1} parent=1 // pred_check
      _
    $region47: #{tpu_custom_call.1} parent=1 // pred_check_branch
      %94 = sbr.rel (0) target = $region49
    $region48: #{tpu_custom_call.1} parent=1 // pred_region
      %95 = dma.done [#allocation4], 768
    $region49: #{tpu_custom_call.1} parent=1 // pred_fallthru
      _
    // Predicated region
    $region50: #{tpu_custom_call.1} parent=1 // pred_check
      _
    $region51: #{tpu_custom_call.1} parent=1 // pred_check_branch
      %97 = sbr.rel (0) target = $region53
    $region52: #{tpu_custom_call.1} parent=1 // pred_region
      %98 = dma.done [#allocation6], 8960
    $region53: #{tpu_custom_call.1} parent=1 // pred_fallthru
      _
    // Predicated region
    $region54: #{tpu_custom_call.1} parent=1 // pred_check
      _
    $region55: #{tpu_custom_call.1} parent=1 // pred_check_branch
      %100 = sbr.rel (0) target = $region57
    $region56: #{tpu_custom_call.1} parent=1 // pred_region
      %101 = dma.done [#allocation6], 8192
    $region57: #{tpu_custom_call.1} parent=1 // pred_fallthru
      _
    // Predicated region
    $region58: #{tpu_custom_call.1} parent=1 // pred_check
      _
    $region59: #{tpu_custom_call.1} parent=1 // pred_check_branch
      %103 = sbr.rel (0) target = $region61
    $region60: #{tpu_custom_call.1} parent=1 // pred_region
      %104 = dma.done [#allocation9], 4096
    $region61: #{tpu_custom_call.1} parent=1 // pred_fallthru
      _
    // Predicated region
    $region62: #{tpu_custom_call.1} parent=1 // pred_check
      _
    $region63: #{tpu_custom_call.1} parent=1 // pred_check_branch
      %106 = sbr.rel (0) target = $region65
    $region64: #{tpu_custom_call.1} parent=1 // pred_region
      %107 = dma.done [#allocation9], 2048
    $region65: #{tpu_custom_call.1} parent=1 // pred_fallthru
      _
    %v108 = vld [vmem:[#allocation3] sm:$0xff]
    %v109 = vld [vmem:[#allocation3 + $0x8] sm:$0xff]
    %v110 = vld [vmem:[#allocation3 + $0x10] sm:$0xff]
    %v111 = vld [vmem:[#allocation3 + $0x18] sm:$0xff]
    %v112 = vld [vmem:[#allocation3 + $0x20] sm:$0xff]
    %v113 = vld [vmem:[#allocation3 + $0x28] sm:$0xff]
    %v114 = vld [vmem:[#allocation5] sm:$0xff]
    %v115 = vld [vmem:[#allocation5 + $0x8] sm:$0xff]
    %v116 = vld [vmem:[#allocation5 + $0x10] sm:$0xff]
    %v117 = vld [vmem:[#allocation5 + $0x18] sm:$0xff]
    %v118 = vld [vmem:[#allocation5 + $0x20] sm:$0xff]
    %v119 = vld [vmem:[#allocation5 + $0x28] sm:$0xff]
    %v120 = vld [vmem:[#allocation5 + $0x30] sm:$0xff]
    %v121 = vld [vmem:[#allocation5 + $0x38] sm:$0xff]
    %v122 = vld [vmem:[#allocation5 + $0x40] sm:$0xff]
    %v123 = vld [vmem:[#allocation5 + $0x48] sm:$0xff]
    %v124 = vld [vmem:[#allocation5 + $0x50] sm:$0xff]
    %v125 = vld [vmem:[#allocation5 + $0x58] sm:$0xff]
    %v126 = vld [vmem:[#allocation5 + $0x60] sm:$0xff]
    %v127 = vld [vmem:[#allocation5 + $0x68] sm:$0xff]
    %v128 = vld [vmem:[#allocation5 + $0x70] sm:$0xff]
    %v129 = vld [vmem:[#allocation5 + $0x78] sm:$0xff]
    %v130 = vld [vmem:[#allocation5 + $0x80] sm:$0xff]
    %v131 = vld [vmem:[#allocation5 + $0x88] sm:$0xff]
    %v132 = vld [vmem:[#allocation5 + $0x90] sm:$0xff]
    %v133 = vld [vmem:[#allocation5 + $0x98] sm:$0xff]
    %v134 = vld [vmem:[#allocation5 + $0xa0] sm:$0xff]
    %v135 = vld [vmem:[#allocation5 + $0xa8] sm:$0xff]
    %v136 = vld [vmem:[#allocation5 + $0xb0] sm:$0xff]
    %v137 = vld [vmem:[#allocation5 + $0xb8] sm:$0xff]
    %v138 = vld [vmem:[#allocation5 + $0xc0] sm:$0xff]
    %v139 = vld [vmem:[#allocation5 + $0xc8] sm:$0xff]
    %v140 = vld [vmem:[#allocation5 + $0xd0] sm:$0xff]
    %v141 = vld [vmem:[#allocation5 + $0xd8] sm:$0xff]
    %v142 = vld [vmem:[#allocation5 + $0xe0] sm:$0xff]
    %v143 = vld [vmem:[#allocation5 + $0xe8] sm:$0xff]
    %v144 = vld [vmem:[#allocation5 + $0xf0] sm:$0xff]
    %v145 = vld [vmem:[#allocation5 + $0xf8] sm:$0xff]
    %v146 = vld [vmem:[#allocation5 + $0x100] sm:$0xff]
    %v147 = vld [vmem:[#allocation5 + $0x108] sm:$0xff]
    %v148 = vld [vmem:[#allocation5 + $0x110] sm:$0xff]
    %v149 = vld [vmem:[#allocation5 + $0x118] sm:$0xff]
    %v150 = vld [vmem:[#allocation5 + $0x120] sm:$0xff]
    %v151 = vld [vmem:[#allocation5 + $0x128] sm:$0xff]
    %v152 = vld [vmem:[#allocation5 + $0x130] sm:$0xff]
    %v153 = vld [vmem:[#allocation5 + $0x138] sm:$0xff]
    %v154 = vld [vmem:[#allocation5 + $0x140] sm:$0xff]
    %v155 = vld [vmem:[#allocation5 + $0x148] sm:$0xff]
    %v156 = vld [vmem:[#allocation5 + $0x150] sm:$0xff]
    %v157 = vld [vmem:[#allocation5 + $0x158] sm:$0xff]
    %v158 = vld [vmem:[#allocation5 + $0x160] sm:$0xff]
    %v159 = vld [vmem:[#allocation5 + $0x168] sm:$0xff]
    %v160 = vld [vmem:[#allocation5 + $0x170] sm:$0xff]
    %v161 = vld [vmem:[#allocation5 + $0x178] sm:$0xff]
    %v162 = vld [vmem:[#allocation5 + $0x180] sm:$0xff]
    %v163 = vld [vmem:[#allocation5 + $0x188] sm:$0xff]
    %v164 = vld [vmem:[#allocation5 + $0x190] sm:$0xff]
    %v165 = vld [vmem:[#allocation5 + $0x198] sm:$0xff]
    %v166 = vld [vmem:[#allocation5 + $0x1a0] sm:$0xff]
    %v167 = vld [vmem:[#allocation5 + $0x1a8] sm:$0xff]
    %v168 = vld [vmem:[#allocation5 + $0x1b0] sm:$0xff]
    %v169 = vld [vmem:[#allocation5 + $0x1b8] sm:$0xff]
    %v170 = vld [vmem:[#allocation5 + $0x1c0] sm:$0xff]
    %v171 = vld [vmem:[#allocation5 + $0x1c8] sm:$0xff]
    %v172 = vld [vmem:[#allocation5 + $0x1d0] sm:$0xff]
    %v173 = vld [vmem:[#allocation5 + $0x1d8] sm:$0xff]
    %v174 = vld [vmem:[#allocation5 + $0x1e0] sm:$0xff]
    %v175 = vld [vmem:[#allocation5 + $0x1e8] sm:$0xff]
    %v176 = vld [vmem:[#allocation5 + $0x1f0] sm:$0xff]
    %v177 = vld [vmem:[#allocation5 + $0x1f8] sm:$0xff]
    %v178 = vld [vmem:[#allocation5 + $0x200] sm:$0xff]
    %v179 = vld [vmem:[#allocation5 + $0x208] sm:$0xff]
    %v180 = vld [vmem:[#allocation5 + $0x210] sm:$0xff]
    %v181 = vld [vmem:[#allocation5 + $0x218] sm:$0xff]
    %v182 = vld [vmem:[#allocation5 + $0x220] sm:$0xff]
    %v183 = vld [vmem:[#allocation5 + $0x228] sm:$0xff]
    %v184 = vld [vmem:[%s2] sm:$0x3]
    %v186 = vlaneseq
    %v187 = vshrl.u32 %v186, 7
    %v188 = vsub.s32 0, %v187
    %v189 = vrot.slane %v184, %v188
    %v190 = vlaneseq
    %v191 = vshrl.u32 %v190, 7
    %v192 = vsub.s32 1, %v191
    %v193 = vrot.slane %v184, %v192
    %vm196 = vcmask 195584
    %v198 = vsel %vm196, %v110, 0
    %v201 = vsel %vm196, %v113, 0
    %203 = vmatprep.subr.mxu0 %v115
    %204 = vmatpush1.msra.mxu0 %v114
    %205 = vmatprep.subr.mxu0 %v117
    %206 = vmatpush1.msra.mxu0 %v116
    %207 = vmatprep.subr.mxu0 %v119
    %208 = vmatpush1.msra.mxu0 %v118
    %209 = vmatprep.subr.mxu0 %v121
    %210 = vmatpush1.msra.mxu0 %v120
    %211 = vmatprep.subr.mxu0 %v123
    %212 = vmatpush1.msra.mxu0 %v122
    %213 = vmatprep.subr.mxu0 %v125
    %214 = vmatpush1.msra.mxu0 %v124
    %215 = vmatprep.subr.mxu0 %v127
    %216 = vmatpush1.msra.mxu0 %v126
    %217 = vmatprep.subr.mxu0 %v129
    %218 = vmatpush1.msra.mxu0 %v128
    %219 = vmatprep.subr.mxu0 %v131
    %220 = vmatpush1.msra.mxu0 %v130
    %221 = vmatprep.subr.mxu0 %v133
    %222 = vmatpush1.msra.mxu0 %v132
    %223 = vmatprep.subr.mxu0 %v135
    %224 = vmatpush1.msra.mxu0 %v134
    %225 = vmatprep.subr.mxu0 %v137
    %226 = vmatpush1.msra.mxu0 %v136
    %227 = vmatprep.subr.mxu0 %v139
    %228 = vmatpush1.msra.mxu0 %v138
    %229 = vmatprep.subr.mxu0 %v141
    %230 = vmatpush1.msra.mxu0 %v140
    %231 = vmatprep.subr.mxu0 %v143
    %232 = vmatpush1.msra.mxu0 %v142
    %233 = vmatprep.subr.mxu0 %v145
    %234 = vmatpush1.msra.mxu0 %v144
    %235 = vmatprep.subr.mxu0 %v147
    %236 = vmatpush1.msra.mxu0 %v146
    %237 = vmatprep.subr.mxu0 %v149
    %238 = vmatpush1.msra.mxu0 %v148
    %239 = vmatprep.subr.mxu0 %v151
    %240 = vmatpush1.msra.mxu0 %v150
    %241 = vmatprep.subr.mxu0 %v153
    %242 = vmatpush1.msra.mxu0 %v152
    %243 = vmatprep.subr.mxu0 %v155
    %244 = vmatpush1.msra.mxu0 %v154
    %245 = vmatprep.subr.mxu0 %v157
    %246 = vmatpush1.msra.mxu0 %v156
    %247 = vmatprep.subr.mxu0 %v159
    %248 = vmatpush1.msra.mxu0 %v158
    %249 = vmatprep.subr.mxu0 %v161
    %250 = vmatpush1.msra.mxu0 %v160
    %251 = vmatprep.subr.mxu0 %v163
    %252 = vmatpush1.msra.mxu0 %v162
    %253 = vmatprep.subr.mxu0 %v165
    %254 = vmatpush1.msra.mxu0 %v164
    %255 = vmatprep.subr.mxu0 %v167
    %256 = vmatpush1.msra.mxu0 %v166
    %257 = vmatprep.subr.mxu0 %v169
    %258 = vmatpush1.msra.mxu0 %v168
    %259 = vmatprep.subr.mxu0 %v171
    %260 = vmatpush1.msra.mxu0 %v170
    %261 = vmatprep.subr.mxu0 %v173
    %262 = vmatpush1.msra.mxu0 %v172
    %263 = vmatprep.subr.mxu0 %v175
    %264 = vmatpush1.msra.mxu0 %v174
    %265 = vmatprep.subr.mxu0 %v177
    %266 = vmatpush1.msra.mxu0 %v176
    %267 = vmatprep.mubr.f32.mxu0 %v109
    %268 = vmatmul.mubr.f32.gmra.mrb[0].mxu0 %v108
    %v269 = vpop.f32.mrb[0].mxu0
    %v270 = vadd.f32 %v189, %v269
    %v271 = vpop.f32.mrb[0].mxu0
    %v272 = vadd.f32 %v193, %v271
    %273 = vmatprep.mubr.f32.mxu0 %v112
    %274 = vmatmul.mubr.f32.gmra.mrb[0].mxu0 %v111
    %v275 = vpop.f32.mrb[0].mxu0
    %v276 = vadd.f32 %v189, %v275
    %v277 = vpop.f32.mrb[0].mxu0
    %v278 = vadd.f32 %v193, %v277
    %279 = vdwg.mxu0
    %280 = vmatprep.subr.mxu0 %v179
    %281 = vmatpush1.msra.mxu0 %v178
    %282 = vmatprep.subr.mxu0 %v181
    %283 = vmatpush1.msra.mxu0 %v180
    %284 = vmatprep.subr.mxu0 %v183
    %285 = vmatpush1.msra.mxu0 %v182
    %286 = vmatprep.subr.mxu0 0.0
    %287 = vmatpush1.msra.mxu0 0.0
    %288 = vmatprep.subr.mxu0 0.0
    %289 = vmatpush1.msra.mxu0 0.0
    %290 = vmatprep.subr.mxu0 0.0
    %291 = vmatpush1.msra.mxu0 0.0
    %292 = vmatprep.subr.mxu0 0.0
    %293 = vmatpush1.msra.mxu0 0.0
    %294 = vmatprep.subr.mxu0 0.0
    %295 = vmatpush1.msra.mxu0 0.0
    %296 = vmatprep.subr.mxu0 0.0
    %297 = vmatpush1.msra.mxu0 0.0
    %298 = vmatprep.subr.mxu0 0.0
    %299 = vmatpush1.msra.mxu0 0.0
    %300 = vmatprep.subr.mxu0 0.0
    %301 = vmatpush1.msra.mxu0 0.0
    %302 = vmatprep.subr.mxu0 0.0
    %303 = vmatpush1.msra.mxu0 0.0
    %304 = vmatprep.subr.mxu0 0.0
    %305 = vmatpush1.msra.mxu0 0.0
    %306 = vmatprep.subr.mxu0 0.0
    %307 = vmatpush1.msra.mxu0 0.0
    %308 = vmatprep.subr.mxu0 0.0
    %309 = vmatpush1.msra.mxu0 0.0
    %310 = vmatprep.subr.mxu0 0.0
    %311 = vmatpush1.msra.mxu0 0.0
    %312 = vmatprep.subr.mxu0 0.0
    %313 = vmatpush1.msra.mxu0 0.0
    %314 = vmatprep.subr.mxu0 0.0
    %315 = vmatpush1.msra.mxu0 0.0
    %316 = vmatprep.subr.mxu0 0.0
    %317 = vmatpush1.msra.mxu0 0.0
    %318 = vmatprep.subr.mxu0 0.0
    %319 = vmatpush1.msra.mxu0 0.0
    %320 = vmatprep.subr.mxu0 0.0
    %321 = vmatpush1.msra.mxu0 0.0
    %322 = vmatprep.subr.mxu0 0.0
    %323 = vmatpush1.msra.mxu0 0.0
    %324 = vmatprep.subr.mxu0 0.0
    %325 = vmatpush1.msra.mxu0 0.0
    %326 = vmatprep.subr.mxu0 0.0
    %327 = vmatpush1.msra.mxu0 0.0
    %328 = vmatprep.subr.mxu0 0.0
    %329 = vmatpush1.msra.mxu0 0.0
    %330 = vmatprep.subr.mxu0 0.0
    %331 = vmatpush1.msra.mxu0 0.0
    %332 = vmatprep.subr.mxu0 0.0
    %333 = vmatpush1.msra.mxu0 0.0
    %334 = vmatprep.subr.mxu0 0.0
    %335 = vmatpush1.msra.mxu0 0.0
    %336 = vmatprep.subr.mxu0 0.0
    %337 = vmatpush1.msra.mxu0 0.0
    %338 = vmatprep.subr.mxu0 0.0
    %339 = vmatpush1.msra.mxu0 0.0
    %340 = vmatprep.subr.mxu0 0.0
    %341 = vmatpush1.msra.mxu0 0.0
    %342 = vmatprep.subr.mxu0 0.0
    %343 = vmatpush1.msra.mxu0 0.0
    %344 = vmatprep.mubr.f32.mxu0 0.0
    %345 = vmatmul.mubr.f32.gmra.mrb[0].mxu0 %v198
    %v346 = vpop.f32.mrb[0].mxu0
    %v347 = vadd.f32 %v270, %v346
    %v348 = vpop.f32.mrb[0].mxu0
    %v349 = vadd.f32 %v272, %v348
    %350 = vmatprep.mubr.f32.mxu0 0.0
    %351 = vmatmul.mubr.f32.gmra.mrb[0].mxu0 %v201
    %v352 = vpop.f32.mrb[0].mxu0
    %v353 = vadd.f32 %v276, %v352
    %v354 = vpop.f32.mrb[0].mxu0
    %v355 = vadd.f32 %v278, %v354
    %356 = vdwg.mxu0
    %v357 = vxor.u32 %v347, 2147483648
    %v358 = vxor.u32 %v349, 2147483648
    %v359 = vxor.u32 %v353, 2147483648
    %v360 = vxor.u32 %v355, 2147483648
    %v361 = vmul.f32 %v357, 1.442695
    %v362 = vpow.pop %v361
    %v363 = vmul.f32 %v358, 1.442695
    %v364 = vpow.pop %v363
    %v365 = vmul.f32 %v359, 1.442695
    %v366 = vpow.pop %v365
    %v367 = vmul.f32 %v360, 1.442695
    %v368 = vpow.pop %v367
    %v369 = vadd.f32 %v362, 1.0
    %v370 = vadd.f32 %v364, 1.0
    %v371 = vadd.f32 %v366, 1.0
    %v372 = vadd.f32 %v368, 1.0
    %v373 = vrcp.pop %v369
    %v374 = vmul.f32 1.0, %v373
    %v375 = vrcp.pop %v370
    %v376 = vmul.f32 1.0, %v375
    %v377 = vrcp.pop %v371
    %v378 = vmul.f32 1.0, %v377
    %v379 = vrcp.pop %v372
    %v380 = vmul.f32 1.0, %v379
    %v381 = vmul.f32 %v347, %v374
    %v382 = vmul.f32 %v349, %v376
    %v383 = vmul.f32 %v353, %v378
    %v384 = vmul.f32 %v355, %v380
    %v385 = vld [vmem:[#allocation7] sm:$0xff]
    %v386 = vld [vmem:[#allocation7 + $0x8] sm:$0xff]
    %v387 = vld [vmem:[#allocation7 + $0x10] sm:$0xff]
    %v388 = vld [vmem:[#allocation7 + $0x18] sm:$0xff]
    %v389 = vld [vmem:[#allocation7 + $0x20] sm:$0xff]
    %v390 = vld [vmem:[#allocation7 + $0x28] sm:$0xff]
    %v391 = vld [vmem:[#allocation7 + $0x30] sm:$0xff]
    %v392 = vld [vmem:[#allocation7 + $0x38] sm:$0xff]
    %v393 = vld [vmem:[#allocation7 + $0x40] sm:$0xff]
    %v394 = vld [vmem:[#allocation7 + $0x48] sm:$0xff]
    %v395 = vld [vmem:[#allocation7 + $0x50] sm:$0xff]
    %v396 = vld [vmem:[#allocation7 + $0x58] sm:$0xff]
    %v397 = vld [vmem:[#allocation7 + $0x60] sm:$0xff]
    %v398 = vld [vmem:[#allocation7 + $0x68] sm:$0xff]
    %v399 = vld [vmem:[#allocation7 + $0x70] sm:$0xff]
    %v400 = vld [vmem:[#allocation7 + $0x78] sm:$0xff]
    %v401 = vld [vmem:[#allocation7 + $0x80] sm:$0xff]
    %v402 = vld [vmem:[#allocation7 + $0x88] sm:$0xff]
    %v403 = vld [vmem:[#allocation7 + $0x90] sm:$0xff]
    %v404 = vld [vmem:[#allocation7 + $0x98] sm:$0xff]
    %v405 = vld [vmem:[#allocation7 + $0xa0] sm:$0xff]
    %v406 = vld [vmem:[#allocation7 + $0xa8] sm:$0xff]
    %v407 = vld [vmem:[#allocation7 + $0xb0] sm:$0xff]
    %v408 = vld [vmem:[#allocation7 + $0xb8] sm:$0xff]
    %v409 = vld [vmem:[#allocation7 + $0xc0] sm:$0xff]
    %v410 = vld [vmem:[#allocation7 + $0xc8] sm:$0xff]
    %v411 = vld [vmem:[#allocation7 + $0xd0] sm:$0xff]
    %v412 = vld [vmem:[#allocation7 + $0xd8] sm:$0xff]
    %v413 = vld [vmem:[#allocation7 + $0xe0] sm:$0xff]
    %v414 = vld [vmem:[#allocation7 + $0xe8] sm:$0xff]
    %v415 = vld [vmem:[#allocation7 + $0xf0] sm:$0xff]
    %v416 = vld [vmem:[#allocation7 + $0xf8] sm:$0xff]
    %v417 = vld [vmem:[#allocation7 + $0x100] sm:$0xff]
    %v418 = vld [vmem:[#allocation7 + $0x108] sm:$0xff]
    %v419 = vld [vmem:[#allocation7 + $0x110] sm:$0xff]
    %v420 = vld [vmem:[#allocation7 + $0x118] sm:$0xff]
    %v421 = vld [vmem:[#allocation7 + $0x120] sm:$0xff]
    %v422 = vld [vmem:[#allocation7 + $0x128] sm:$0xff]
    %v423 = vld [vmem:[#allocation7 + $0x130] sm:$0xff]
    %v424 = vld [vmem:[#allocation7 + $0x138] sm:$0xff]
    %v425 = vld [vmem:[#allocation7 + $0x140] sm:$0xff]
    %v426 = vld [vmem:[#allocation7 + $0x148] sm:$0xff]
    %v427 = vld [vmem:[#allocation7 + $0x150] sm:$0xff]
    %v428 = vld [vmem:[#allocation7 + $0x158] sm:$0xff]
    %v429 = vld [vmem:[#allocation7 + $0x160] sm:$0xff]
    %v430 = vld [vmem:[#allocation7 + $0x168] sm:$0xff]
    %v431 = vld [vmem:[#allocation7 + $0x170] sm:$0xff]
    %v432 = vld [vmem:[#allocation7 + $0x178] sm:$0xff]
    %v433 = vld [vmem:[#allocation7 + $0x180] sm:$0xff]
    %v434 = vld [vmem:[#allocation7 + $0x188] sm:$0xff]
    %v435 = vld [vmem:[#allocation7 + $0x190] sm:$0xff]
    %v436 = vld [vmem:[#allocation7 + $0x198] sm:$0xff]
    %v437 = vld [vmem:[#allocation7 + $0x1a0] sm:$0xff]
    %v438 = vld [vmem:[#allocation7 + $0x1a8] sm:$0xff]
    %v439 = vld [vmem:[#allocation7 + $0x1b0] sm:$0xff]
    %v440 = vld [vmem:[#allocation7 + $0x1b8] sm:$0xff]
    %v441 = vld [vmem:[#allocation7 + $0x1c0] sm:$0xff]
    %v442 = vld [vmem:[#allocation7 + $0x1c8] sm:$0xff]
    %v443 = vld [vmem:[#allocation7 + $0x1d0] sm:$0xff]
    %v444 = vld [vmem:[#allocation7 + $0x1d8] sm:$0xff]
    %v445 = vld [vmem:[#allocation7 + $0x1e0] sm:$0xff]
    %v446 = vld [vmem:[#allocation7 + $0x1e8] sm:$0xff]
    %v447 = vld [vmem:[#allocation7 + $0x1f0] sm:$0xff]
    %v448 = vld [vmem:[#allocation7 + $0x1f8] sm:$0xff]
    %v449 = vld [vmem:[%s4] sm:$0x3]
    %v451 = vlaneseq
    %v452 = vshrl.u32 %v451, 7
    %v453 = vsub.s32 0, %v452
    %v454 = vrot.slane %v449, %v453
    %v455 = vlaneseq
    %v456 = vshrl.u32 %v455, 7
    %v457 = vsub.s32 1, %v456
    %v458 = vrot.slane %v449, %v457
    %461 = vmatprep.subr.mxu0 %v386
    %462 = vmatpush1.msra.mxu0 %v385
    %463 = vmatprep.subr.mxu0 %v388
    %464 = vmatpush1.msra.mxu0 %v387
    %465 = vmatprep.subr.mxu0 %v390
    %466 = vmatpush1.msra.mxu0 %v389
    %467 = vmatprep.subr.mxu0 %v392
    %468 = vmatpush1.msra.mxu0 %v391
    %469 = vmatprep.subr.mxu0 %v394
    %470 = vmatpush1.msra.mxu0 %v393
    %471 = vmatprep.subr.mxu0 %v396
    %472 = vmatpush1.msra.mxu0 %v395
    %473 = vmatprep.subr.mxu0 %v398
    %474 = vmatpush1.msra.mxu0 %v397
    %475 = vmatprep.subr.mxu0 %v400
    %476 = vmatpush1.msra.mxu0 %v399
    %477 = vmatprep.subr.mxu0 %v402
    %478 = vmatpush1.msra.mxu0 %v401
    %479 = vmatprep.subr.mxu0 %v404
    %480 = vmatpush1.msra.mxu0 %v403
    %481 = vmatprep.subr.mxu0 %v406
    %482 = vmatpush1.msra.mxu0 %v405
    %483 = vmatprep.subr.mxu0 %v408
    %484 = vmatpush1.msra.mxu0 %v407
    %485 = vmatprep.subr.mxu0 %v410
    %486 = vmatpush1.msra.mxu0 %v409
    %487 = vmatprep.subr.mxu0 %v412
    %488 = vmatpush1.msra.mxu0 %v411
    %489 = vmatprep.subr.mxu0 %v414
    %490 = vmatpush1.msra.mxu0 %v413
    %491 = vmatprep.subr.mxu0 %v416
    %492 = vmatpush1.msra.mxu0 %v415
    %493 = vmatprep.subr.mxu0 %v418
    %494 = vmatpush1.msra.mxu0 %v417
    %495 = vmatprep.subr.mxu0 %v420
    %496 = vmatpush1.msra.mxu0 %v419
    %497 = vmatprep.subr.mxu0 %v422
    %498 = vmatpush1.msra.mxu0 %v421
    %499 = vmatprep.subr.mxu0 %v424
    %500 = vmatpush1.msra.mxu0 %v423
    %501 = vmatprep.subr.mxu0 %v426
    %502 = vmatpush1.msra.mxu0 %v425
    %503 = vmatprep.subr.mxu0 %v428
    %504 = vmatpush1.msra.mxu0 %v427
    %505 = vmatprep.subr.mxu0 %v430
    %506 = vmatpush1.msra.mxu0 %v429
    %507 = vmatprep.subr.mxu0 %v432
    %508 = vmatpush1.msra.mxu0 %v431
    %509 = vmatprep.subr.mxu0 %v434
    %510 = vmatpush1.msra.mxu0 %v433
    %511 = vmatprep.subr.mxu0 %v436
    %512 = vmatpush1.msra.mxu0 %v435
    %513 = vmatprep.subr.mxu0 %v438
    %514 = vmatpush1.msra.mxu0 %v437
    %515 = vmatprep.subr.mxu0 %v440
    %516 = vmatpush1.msra.mxu0 %v439
    %517 = vmatprep.subr.mxu0 %v442
    %518 = vmatpush1.msra.mxu0 %v441
    %519 = vmatprep.subr.mxu0 %v444
    %520 = vmatpush1.msra.mxu0 %v443
    %521 = vmatprep.subr.mxu0 %v446
    %522 = vmatpush1.msra.mxu0 %v445
    %523 = vmatprep.subr.mxu0 %v448
    %524 = vmatpush1.msra.mxu0 %v447
    %525 = vmatprep.mubr.f32.mxu0 %v382
    %526 = vmatmul.mubr.f32.gmra.mrb[0].mxu0 %v381
    %v527 = vpop.f32.mrb[0].mxu0
    %v528 = vadd.f32 %v454, %v527
    %v529 = vpop.f32.mrb[0].mxu0
    %v530 = vadd.f32 %v458, %v529
    %531 = vmatprep.mubr.f32.mxu0 %v384
    %532 = vmatmul.mubr.f32.gmra.mrb[0].mxu0 %v383
    %v533 = vpop.f32.mrb[0].mxu0
    %v534 = vadd.f32 %v454, %v533
    %v535 = vpop.f32.mrb[0].mxu0
    %v536 = vadd.f32 %v458, %v535
    %537 = vdwg.mxu0
    %v538 = vld [vmem:[#allocation8] sm:$0xff]
    %v539 = vld [vmem:[#allocation8 + $0x8] sm:$0xff]
    %v540 = vld [vmem:[#allocation8 + $0x10] sm:$0xff]
    %v541 = vld [vmem:[#allocation8 + $0x18] sm:$0xff]
    %v542 = vld [vmem:[#allocation8 + $0x20] sm:$0xff]
    %v543 = vld [vmem:[#allocation8 + $0x28] sm:$0xff]
    %v544 = vld [vmem:[#allocation8 + $0x30] sm:$0xff]
    %v545 = vld [vmem:[#allocation8 + $0x38] sm:$0xff]
    %v546 = vld [vmem:[#allocation8 + $0x40] sm:$0xff]
    %v547 = vld [vmem:[#allocation8 + $0x48] sm:$0xff]
    %v548 = vld [vmem:[#allocation8 + $0x50] sm:$0xff]
    %v549 = vld [vmem:[#allocation8 + $0x58] sm:$0xff]
    %v550 = vld [vmem:[#allocation8 + $0x60] sm:$0xff]
    %v551 = vld [vmem:[#allocation8 + $0x68] sm:$0xff]
    %v552 = vld [vmem:[#allocation8 + $0x70] sm:$0xff]
    %v553 = vld [vmem:[#allocation8 + $0x78] sm:$0xff]
    %v554 = vld [vmem:[#allocation8 + $0x80] sm:$0xff]
    %v555 = vld [vmem:[#allocation8 + $0x88] sm:$0xff]
    %v556 = vld [vmem:[#allocation8 + $0x90] sm:$0xff]
    %v557 = vld [vmem:[#allocation8 + $0x98] sm:$0xff]
    %v558 = vld [vmem:[#allocation8 + $0xa0] sm:$0xff]
    %v559 = vld [vmem:[#allocation8 + $0xa8] sm:$0xff]
    %v560 = vld [vmem:[#allocation8 + $0xb0] sm:$0xff]
    %v561 = vld [vmem:[#allocation8 + $0xb8] sm:$0xff]
    %v562 = vld [vmem:[#allocation8 + $0xc0] sm:$0xff]
    %v563 = vld [vmem:[#allocation8 + $0xc8] sm:$0xff]
    %v564 = vld [vmem:[#allocation8 + $0xd0] sm:$0xff]
    %v565 = vld [vmem:[#allocation8 + $0xd8] sm:$0xff]
    %v566 = vld [vmem:[#allocation8 + $0xe0] sm:$0xff]
    %v567 = vld [vmem:[#allocation8 + $0xe8] sm:$0xff]
    %v568 = vld [vmem:[#allocation8 + $0xf0] sm:$0xff]
    %v569 = vld [vmem:[#allocation8 + $0xf8] sm:$0xff]
    %v570 = vld [vmem:[%s6] sm:$0x1]
    %v572 = vlaneseq
    %v573 = vshrl.u32 %v572, 7
    %v574 = vsub.s32 0, %v573
    %v575 = vrot.slane %v570, %v574
    %577 = vmatprep.subr.mxu0 0.0
    %578 = vmatpush1.msra.mxu0 %v538
    %579 = vmatprep.subr.mxu0 0.0
    %580 = vmatpush1.msra.mxu0 %v539
    %581 = vmatprep.subr.mxu0 0.0
    %582 = vmatpush1.msra.mxu0 %v540
    %583 = vmatprep.subr.mxu0 0.0
    %584 = vmatpush1.msra.mxu0 %v541
    %585 = vmatprep.subr.mxu0 0.0
    %586 = vmatpush1.msra.mxu0 %v542
    %587 = vmatprep.subr.mxu0 0.0
    %588 = vmatpush1.msra.mxu0 %v543
    %589 = vmatprep.subr.mxu0 0.0
    %590 = vmatpush1.msra.mxu0 %v544
    %591 = vmatprep.subr.mxu0 0.0
    %592 = vmatpush1.msra.mxu0 %v545
    %593 = vmatprep.subr.mxu0 0.0
    %594 = vmatpush1.msra.mxu0 %v546
    %595 = vmatprep.subr.mxu0 0.0
    %596 = vmatpush1.msra.mxu0 %v547
    %597 = vmatprep.subr.mxu0 0.0
    %598 = vmatpush1.msra.mxu0 %v548
    %599 = vmatprep.subr.mxu0 0.0
    %600 = vmatpush1.msra.mxu0 %v549
    %601 = vmatprep.subr.mxu0 0.0
    %602 = vmatpush1.msra.mxu0 %v550
    %603 = vmatprep.subr.mxu0 0.0
    %604 = vmatpush1.msra.mxu0 %v551
    %605 = vmatprep.subr.mxu0 0.0
    %606 = vmatpush1.msra.mxu0 %v552
    %607 = vmatprep.subr.mxu0 0.0
    %608 = vmatpush1.msra.mxu0 %v553
    %609 = vmatprep.subr.mxu0 0.0
    %610 = vmatpush1.msra.mxu0 %v554
    %611 = vmatprep.subr.mxu0 0.0
    %612 = vmatpush1.msra.mxu0 %v555
    %613 = vmatprep.subr.mxu0 0.0
    %614 = vmatpush1.msra.mxu0 %v556
    %615 = vmatprep.subr.mxu0 0.0
    %616 = vmatpush1.msra.mxu0 %v557
    %617 = vmatprep.subr.mxu0 0.0
    %618 = vmatpush1.msra.mxu0 %v558
    %619 = vmatprep.subr.mxu0 0.0
    %620 = vmatpush1.msra.mxu0 %v559
    %621 = vmatprep.subr.mxu0 0.0
    %622 = vmatpush1.msra.mxu0 %v560
    %623 = vmatprep.subr.mxu0 0.0
    %624 = vmatpush1.msra.mxu0 %v561
    %625 = vmatprep.subr.mxu0 0.0
    %626 = vmatpush1.msra.mxu0 %v562
    %627 = vmatprep.subr.mxu0 0.0
    %628 = vmatpush1.msra.mxu0 %v563
    %629 = vmatprep.subr.mxu0 0.0
    %630 = vmatpush1.msra.mxu0 %v564
    %631 = vmatprep.subr.mxu0 0.0
    %632 = vmatpush1.msra.mxu0 %v565
    %633 = vmatprep.subr.mxu0 0.0
    %634 = vmatpush1.msra.mxu0 %v566
    %635 = vmatprep.subr.mxu0 0.0
    %636 = vmatpush1.msra.mxu0 %v567
    %637 = vmatprep.subr.mxu0 0.0
    %638 = vmatpush1.msra.mxu0 %v568
    %639 = vmatprep.subr.mxu0 0.0
    %640 = vmatpush1.msra.mxu0 %v569
    %641 = vmatprep.mubr.f32.mxu0 %v530
    %642 = vmatmul.mubr.f32.gmra.mrb[0].mxu0 %v528
    %v643 = vpop.f32.mrb[0].mxu0
    %v644 = vadd.f32 %v575, %v643
    %v645 = vpop.f32.mrb[0].mxu0
    %646 = vmatprep.mubr.f32.mxu0 %v536
    %647 = vmatmul.mubr.f32.gmra.mrb[0].mxu0 %v534
    %v648 = vpop.f32.mrb[0].mxu0
    %v649 = vadd.f32 %v575, %v648
    %v650 = vpop.f32.mrb[0].mxu0
    %651 = vdwg.mxu0
    %v652 = vmax.f32 %v644, 0.0
    %v653 = vmax.f32 %v649, 0.0
    %v654 = vld [vmem:[#allocation10] sm:$0xff]
    %v655 = vld [vmem:[#allocation10 + $0x8] sm:$0xff]
    %v656 = vld [vmem:[#allocation10 + $0x10] sm:$0xff]
    %v657 = vld [vmem:[#allocation10 + $0x18] sm:$0xff]
    %v658 = vld [vmem:[#allocation10 + $0x20] sm:$0xff]
    %v659 = vld [vmem:[#allocation10 + $0x28] sm:$0xff]
    %v660 = vld [vmem:[#allocation10 + $0x30] sm:$0xff]
    %v661 = vld [vmem:[#allocation10 + $0x38] sm:$0xff]
    %v662 = vld [vmem:[#allocation10 + $0x40] sm:$0xff]
    %v663 = vld [vmem:[#allocation10 + $0x48] sm:$0xff]
    %v664 = vld [vmem:[#allocation10 + $0x50] sm:$0xff]
    %v665 = vld [vmem:[#allocation10 + $0x58] sm:$0xff]
    %v666 = vld [vmem:[#allocation10 + $0x60] sm:$0xff]
    %v667 = vld [vmem:[#allocation10 + $0x68] sm:$0xff]
    %v668 = vld [vmem:[#allocation10 + $0x70] sm:$0xff]
    %v669 = vld [vmem:[#allocation10 + $0x78] sm:$0xff]
    %v670 = vld [vmem:[%s8] sm:$0x1]
    %v672 = vlaneseq
    %v673 = vshrl.u32 %v672, 7
    %v674 = vsub.s32 0, %v673
    %v675 = vrot.slane %v670, %v674
    %677 = vmatprep.subr.mxu0 0.0
    %678 = vmatpush1.msra.mxu0 %v654
    %679 = vmatprep.subr.mxu0 0.0
    %680 = vmatpush1.msra.mxu0 %v655
    %681 = vmatprep.subr.mxu0 0.0
    %682 = vmatpush1.msra.mxu0 %v656
    %683 = vmatprep.subr.mxu0 0.0
    %684 = vmatpush1.msra.mxu0 %v657
    %685 = vmatprep.subr.mxu0 0.0
    %686 = vmatpush1.msra.mxu0 %v658
    %687 = vmatprep.subr.mxu0 0.0
    %688 = vmatpush1.msra.mxu0 %v659
    %689 = vmatprep.subr.mxu0 0.0
    %690 = vmatpush1.msra.mxu0 %v660
    %691 = vmatprep.subr.mxu0 0.0
    %692 = vmatpush1.msra.mxu0 %v661
    %693 = vmatprep.subr.mxu0 0.0
    %694 = vmatpush1.msra.mxu0 %v662
    %695 = vmatprep.subr.mxu0 0.0
    %696 = vmatpush1.msra.mxu0 %v663
    %697 = vmatprep.subr.mxu0 0.0
    %698 = vmatpush1.msra.mxu0 %v664
    %699 = vmatprep.subr.mxu0 0.0
    %700 = vmatpush1.msra.mxu0 %v665
    %701 = vmatprep.subr.mxu0 0.0
    %702 = vmatpush1.msra.mxu0 %v666
    %703 = vmatprep.subr.mxu0 0.0
    %704 = vmatpush1.msra.mxu0 %v667
    %705 = vmatprep.subr.mxu0 0.0
    %706 = vmatpush1.msra.mxu0 %v668
    %707 = vmatprep.subr.mxu0 0.0
    %708 = vmatpush1.msra.mxu0 %v669
    %709 = vmatprep.subr.mxu0 0.0
    %710 = vmatpush1.msra.mxu0 0.0
    %711 = vmatprep.subr.mxu0 0.0
    %712 = vmatpush1.msra.mxu0 0.0
    %713 = vmatprep.subr.mxu0 0.0
    %714 = vmatpush1.msra.mxu0 0.0
    %715 = vmatprep.subr.mxu0 0.0
    %716 = vmatpush1.msra.mxu0 0.0
    %717 = vmatprep.subr.mxu0 0.0
    %718 = vmatpush1.msra.mxu0 0.0
    %719 = vmatprep.subr.mxu0 0.0
    %720 = vmatpush1.msra.mxu0 0.0
    %721 = vmatprep.subr.mxu0 0.0
    %722 = vmatpush1.msra.mxu0 0.0
    %723 = vmatprep.subr.mxu0 0.0
    %724 = vmatpush1.msra.mxu0 0.0
    %725 = vmatprep.subr.mxu0 0.0
    %726 = vmatpush1.msra.mxu0 0.0
    %727 = vmatprep.subr.mxu0 0.0
    %728 = vmatpush1.msra.mxu0 0.0
    %729 = vmatprep.subr.mxu0 0.0
    %730 = vmatpush1.msra.mxu0 0.0
    %731 = vmatprep.subr.mxu0 0.0
    %732 = vmatpush1.msra.mxu0 0.0
    %733 = vmatprep.subr.mxu0 0.0
    %734 = vmatpush1.msra.mxu0 0.0
    %735 = vmatprep.subr.mxu0 0.0
    %736 = vmatpush1.msra.mxu0 0.0
    %737 = vmatprep.subr.mxu0 0.0
    %738 = vmatpush1.msra.mxu0 0.0
    %739 = vmatprep.subr.mxu0 0.0
    %740 = vmatpush1.msra.mxu0 0.0
    %741 = vmatprep.mubr.f32.mxu0 0.0
    %742 = vmatmul.mubr.f32.gmra.mrb[0].mxu0 %v652
    %v743 = vpop.f32.mrb[0].mxu0
    %v744 = vadd.f32 %v675, %v743
    %v745 = vpop.f32.mrb[0].mxu0
    %746 = vmatprep.mubr.f32.mxu0 0.0
    %747 = vmatmul.mubr.f32.gmra.mrb[0].mxu0 %v653
    %v748 = vpop.f32.mrb[0].mxu0
    %v749 = vadd.f32 %v675, %v748
    %v750 = vpop.f32.mrb[0].mxu0
    %751 = vdwg.mxu0
    %v752 = vmax.f32 %v744, 0.0
    %v753 = vmax.f32 %v749, 0.0
    %v754 = vld [vmem:[%s9] sm:$0x1]
    %v756 = vlaneseq
    %v757 = vshrl.u32 %v756, 7
    %v758 = vsub.s32 0, %v757
    %v759 = vrot.slane %v754, %v758
    %v761 = vmul.f32 %v752, %v759
    %v762 = vmul.f32 %v753, %v759
    %763 = vadd.xlane.f32.xlu0 %v761
    %v764 = vpop.xlane.xlu0 %763
    %765 = vadd.xlane.f32.xlu0 %v762
    %v766 = vpop.xlane.xlu0 %765
    %v767 = vld [vmem:[#allocation2] sm:$0x1]
    %v769 = vlaneseq
    %v770 = vshrl.u32 %v769, 7
    %v771 = vsub.s32 0, %v770
    %v772 = vrot.slane %v767, %v771
    %v774 = vadd.f32 %v764, %v772
    %v775 = vadd.f32 %v766, %v772
    %vm776 = vcmask 7168
    %777 = vst.msk [vmem:[%s11] sm:$0xff] %vm776, %v774
    %778 = vst.msk [vmem:[%s11 + $0x8] sm:$0xff] %vm776, %v775
    // Predicated region
    $region66: #{tpu_custom_call.1} parent=1 // pred_check
      _
    $region67: #{tpu_custom_call.1} parent=1 // pred_check_branch
      %780 = sbr.rel (0) target = $region69
    $region68: #{tpu_custom_call.1} parent=1 // pred_region
      _
    $region69: #{tpu_custom_call.1} parent=1 // pred_fallthru
      _
    // Predicated region
    $region70: #{tpu_custom_call.1} parent=1 // pred_check
      _
    $region71: #{tpu_custom_call.1} parent=1 // pred_check_branch
      %782 = sbr.rel (0) target = $region73
    $region72: #{tpu_custom_call.1} parent=1 // pred_region
      _
    $region73: #{tpu_custom_call.1} parent=1 // pred_fallthru
      _
    %783 = vsyncpa [#allocation4], 1
    %784 = vsyncpa [#allocation6], 1
    %785 = vsyncpa [#allocation9], 1

</llo_original>
